<compile_context>
chip_gen: v7x
topology: tpu7x:2x2x1
jax: 0.10.0
libtpu: 0.0.40
codegen_flags: <defaults>
</compile_context>

<pallas_src>
import jax
import jax.numpy as jnp
from jax.experimental import pallas as pl
from jax.experimental.pallas import tpu as pltpu

FOCAL_LENGTH = 5000.0


def _camera_kernel(prm_ref, pts_ref, out_ref):
    # prm_ref : SMEM (B, 14)  [fx*r00..fx*r02, fy*r10..fy*r12, r20..r22,
    #                          fx*tx, fy*ty, tz, cx, cy]   per batch
    # pts_ref : VMEM (3, rows_tile, 128)   [x|y|z] rows, points packed (row, lane)
    # out_ref : VMEM (2, rows_tile, 128)   [u|v] rows
    b = pl.program_id(0)

    x = pts_ref[0].astype(jnp.float32)          # (rows_tile, 128)
    y = pts_ref[1].astype(jnp.float32)
    z = pts_ref[2].astype(jnp.float32)

    a00 = prm_ref[b, 0]; a01 = prm_ref[b, 1]; a02 = prm_ref[b, 2]     # fx * R row 0
    a10 = prm_ref[b, 3]; a11 = prm_ref[b, 4]; a12 = prm_ref[b, 5]     # fy * R row 1
    r20 = prm_ref[b, 6]; r21 = prm_ref[b, 7]; r22 = prm_ref[b, 8]
    btx = prm_ref[b, 9]; bty = prm_ref[b, 10]; tz = prm_ref[b, 11]    # fx*tx, fy*ty, tz
    cx = prm_ref[b, 12]; cy = prm_ref[b, 13]

    # Pre-scaled [R | t] applied per point (VPU only, no MXU, no homog concat).
    xc = x * a00 + y * a01 + z * a02 + btx
    yc = x * a10 + y * a11 + z * a12 + bty
    zc = x * r20 + y * r21 + z * r22 + tz

    # Perspective divide: EUP approx reciprocal + 1 Newton step (~full f32).
    # NOTE: z == 0 yields NaN here (reference produces +/-inf) — degenerate
    # points only.
    inv_z = pl.reciprocal(zc, approx=True)
    inv_z = inv_z * (2.0 - zc * inv_z)

    out_ref[0] = (xc * inv_z + cx).astype(out_ref.dtype)
    out_ref[1] = (yc * inv_z + cy).astype(out_ref.dtype)


def camera_forward(camera_points, rotation, translation, focal_x, focal_y, center,
                   *, rows_tile=1024):
    """Pallas implementation of Camera.forward.

    camera_points: [B, N, 3]
    rotation     : [B, 3, 3]
    translation  : [B, 3]
    focal_x/y    : [B]
    center       : [B, 2]
    returns      : [B, N, 2]
    """
    assert rows_tile % 8 == 0, "rows_tile must be a multiple of 8 sublanes"
    B, N, _ = camera_points.shape
    dtype = camera_points.dtype

    # Per-batch scalars, with focal lengths folded into rows 0/1 of [R|t].
    fx = focal_x.astype(jnp.float32).reshape(B, 1)
    fy = focal_y.astype(jnp.float32).reshape(B, 1)
    rot = rotation.astype(jnp.float32)
    trn = translation.astype(jnp.float32)
    prm = jnp.concatenate(
        [rot[:, 0, :] * fx,                 # fx*r00, fx*r01, fx*r02
         rot[:, 1, :] * fy,                 # fy*r10, fy*r11, fy*r12
         rot[:, 2, :],                      # r20, r21, r22
         trn[:, 0:1] * fx,                  # fx*tx
         trn[:, 1:2] * fy,                  # fy*ty
         trn[:, 2:3],                       # tz
         center.astype(jnp.float32)],       # cx, cy
        axis=-1)                                                     # (B, 14)

    # Lane/sublane-dense layout: points packed as (row, lane) = (N/128, 128).
    pts = jnp.transpose(camera_points, (0, 2, 1))                    # (B, 3, N)
    n_pad = pl.cdiv(N, 128) * 128
    if n_pad != N:
        # <=127-point pad so the reshape below is legal; z pad = 1 avoids NaN.
        pts = jnp.pad(pts, ((0, 0), (0, 0), (0, n_pad - N)),
                      constant_values=1.0)
    R = n_pad // 128
    pts = pts.reshape(B, 3, R, 128)                                  # free reshape

    # Tile selection along the row axis.
    tile = R if R <= rows_tile else rows_tile
    # v7x megacore: with B == 1, make sure there are >= 2 grid programs.
    if B == 1 and tile == R and R > 8:
        tile = ((pl.cdiv(R, 2) + 7) // 8) * 8
    assert tile == R or tile % 8 == 0

    grid = (B, pl.cdiv(R, tile))   # ragged last row-block is masked by Pallas

    out = pl.pallas_call(
        _camera_kernel,
        out_shape=jax.ShapeDtypeStruct((B, 2, R, 128), dtype),
        grid_spec=pltpu.PrefetchScalarGridSpec(
            num_scalar_prefetch=0,
            grid=grid,
            in_specs=[
                # Whole (B, 14) parameter table, resident in SMEM.
                pl.BlockSpec(memory_space=pltpu.MemorySpace.SMEM),
                # (3, tile, 128) point slab per batch per step.
                pl.BlockSpec((None, 3, tile, 128), lambda b, r: (b, 0, r, 0)),
            ],
            out_specs=pl.BlockSpec((None, 2, tile, 128), lambda b, r: (b, 0, r, 0)),
        ),
        compiler_params=pltpu.CompilerParams(
            dimension_semantics=("parallel", "parallel")),
    )(prm, pts)

    out = out.reshape(B, 2, n_pad)[:, :, :N]   # drop <=127 pad points
    # TODO(synk): if the consumer accepts lane-dense [B, 2, N], return `out`
    # directly and skip this transpose (it moves more HBM bytes than the kernel).
    return jnp.transpose(out, (0, 2, 1))       # (B, N, 2)


def camera_forward_ref(camera_points, rotation, translation, focal_x, focal_y, center):
    """Pure-JAX reference mirroring the PyTorch forward exactly."""
    B, N, _ = camera_points.shape
    dtype = camera_points.dtype
    camera_mat = jnp.zeros((B, 2, 2), dtype=dtype)
    camera_mat = camera_mat.at[:, 0, 0].set(focal_x).at[:, 1, 1].set(focal_y)
    top = jnp.concatenate([rotation, translation[:, :, None]], axis=-1)        # [B, 3, 4]
    bottom = jnp.tile(jnp.array([[[0., 0., 0., 1.]]], dtype=dtype), (B, 1, 1))
    camera_transform = jnp.concatenate([top, bottom], axis=1)                  # [B, 4, 4]
    homog = jnp.ones((B, N, 1), dtype=dtype)
    points_h = jnp.concatenate([camera_points, homog], axis=-1)
    projected = jnp.einsum('bki,bji->bjk', camera_transform, points_h,
                           precision=jax.lax.Precision.HIGHEST)
    img = projected[:, :, :2] / projected[:, :, 2][:, :, None]
    img = jnp.einsum('bki,bji->bjk', camera_mat, img,
                     precision=jax.lax.Precision.HIGHEST) + center[:, None, :]
    return img


if __name__ == "__main__":
    key = jax.random.PRNGKey(0)
    dtype = jnp.float32

    def make_inputs(B, N):
        k_pts, k_trans, k_cen, k_ang = jax.random.split(jax.random.fold_in(key, N), 4)
        camera_points = jax.random.normal(k_pts, (B, N, 3), dtype=dtype)
        # Rotation about z (keeps camera-space z positive), per batch.
        theta = jax.random.uniform(k_ang, (B,), dtype=dtype, minval=-0.3, maxval=0.3)
        c, s = jnp.cos(theta), jnp.sin(theta)
        zeros, ones = jnp.zeros_like(theta), jnp.ones_like(theta)
        rotation = jnp.stack(
            [c, -s, zeros, s, c, zeros, zeros, zeros, ones], axis=-1).reshape(B, 3, 3)
        translation = (jax.random.normal(k_trans, (B, 3), dtype=dtype) * 0.1
                       + jnp.array([0.0, 0.0, 10.0], dtype=dtype))   # keep z > 0
        focal_x = jnp.full((B,), FOCAL_LENGTH, dtype=dtype)
        focal_y = jnp.full((B,), FOCAL_LENGTH, dtype=dtype)
        center = jax.random.normal(k_cen, (B, 2), dtype=dtype) * 5.0
        return camera_points, rotation, translation, focal_x, focal_y, center

    # Small shape: single full-extent (1, 128) row block per batch, N < 128.
    args = make_inputs(2, 16)
    out = jax.block_until_ready(camera_forward(*args))
    ref = camera_forward_ref(*args)
    assert out.shape == (2, 16, 2)
    assert jnp.allclose(out, ref, rtol=1e-4, atol=1e-2), "mismatch vs reference (N=16)"

    # Multi-block + ragged last block + <=127-point pad (N=1200 -> R=10, tile=8).
    args = make_inputs(2, 1200)
    out = jax.block_until_ready(camera_forward(*args, rows_tile=8))
    ref = camera_forward_ref(*args)
    assert out.shape == (2, 1200, 2)
    assert jnp.allclose(out, ref, rtol=1e-4, atol=1e-2), "mismatch vs reference (N=1200)"

    # B == 1 path: tile is capped so the grid has >= 2 programs (v7x megacore).
    args = make_inputs(1, 4096)
    out = jax.block_until_ready(camera_forward(*args))
    ref = camera_forward_ref(*args)
    assert out.shape == (1, 4096, 2)
    assert jnp.allclose(out, ref, rtol=1e-4, atol=1e-2), "mismatch vs reference (N=4096)"

    print("KERNEL_OK")
</pallas_src>

<mosaic_0001>
module attributes {stable_mosaic.version = 11 : i64} {
  func.func @_camera_kernel(%arg0: i32, %arg1: i32, %arg2: memref<2x14xf32, #tpu.memory_space<smem>>, %arg3: memref<1x3x1x128xf32, #tpu.memory_space<vmem>>, %arg4: memref<1x2x1x128xf32, #tpu.memory_space<vmem>>) attributes {dimension_semantics = [#tpu.dimension_semantics<parallel>, #tpu.dimension_semantics<parallel>], iteration_bounds = array<i64: 2, 1>, scalar_prefetch = 0 : i64, scratch_operands = 0 : i64, tpu.core_type = #tpu.core_type<tc>, window_params = [{transform_indices = @transform_0, window_bounds = array<i64: 2, 14>}, {transform_indices = @transform_1, window_bounds = array<i64: 1, 3, 1, 128>}, {transform_indices = @transform_2, window_bounds = array<i64: 1, 2, 1, 128>}]} {
    %c0 = arith.constant 0 : index
    %c0_0 = arith.constant 0 : index
    %c0_1 = arith.constant 0 : index
    %c0_2 = arith.constant 0 : index
    %0 = vector.load %arg3[%c0, %c0_0, %c0_1, %c0_2] : memref<1x3x1x128xf32, #tpu.memory_space<vmem>>, vector<1x1x1x128xf32>
    %1 = vector.shape_cast %0 : vector<1x1x1x128xf32> to vector<1x128xf32>
    %c0_3 = arith.constant 0 : index
    %c1 = arith.constant 1 : index
    %c0_4 = arith.constant 0 : index
    %c0_5 = arith.constant 0 : index
    %2 = vector.load %arg3[%c0_3, %c1, %c0_4, %c0_5] : memref<1x3x1x128xf32, #tpu.memory_space<vmem>>, vector<1x1x1x128xf32>
    %3 = vector.shape_cast %2 : vector<1x1x1x128xf32> to vector<1x128xf32>
    %c0_6 = arith.constant 0 : index
    %c2 = arith.constant 2 : index
    %c0_7 = arith.constant 0 : index
    %c0_8 = arith.constant 0 : index
    %4 = vector.load %arg3[%c0_6, %c2, %c0_7, %c0_8] : memref<1x3x1x128xf32, #tpu.memory_space<vmem>>, vector<1x1x1x128xf32>
    %5 = vector.shape_cast %4 : vector<1x1x1x128xf32> to vector<1x128xf32>
    %6 = arith.index_cast %arg0 : i32 to index
    %c0_9 = arith.constant 0 : index
    %7 = memref.load %arg2[%6, %c0_9] : memref<2x14xf32, #tpu.memory_space<smem>>
    %8 = arith.index_cast %arg0 : i32 to index
    %c1_10 = arith.constant 1 : index
    %9 = memref.load %arg2[%8, %c1_10] : memref<2x14xf32, #tpu.memory_space<smem>>
    %10 = arith.index_cast %arg0 : i32 to index
    %c2_11 = arith.constant 2 : index
    %11 = memref.load %arg2[%10, %c2_11] : memref<2x14xf32, #tpu.memory_space<smem>>
    %12 = arith.index_cast %arg0 : i32 to index
    %c3 = arith.constant 3 : index
    %13 = memref.load %arg2[%12, %c3] : memref<2x14xf32, #tpu.memory_space<smem>>
    %14 = arith.index_cast %arg0 : i32 to index
    %c4 = arith.constant 4 : index
    %15 = memref.load %arg2[%14, %c4] : memref<2x14xf32, #tpu.memory_space<smem>>
    %16 = arith.index_cast %arg0 : i32 to index
    %c5 = arith.constant 5 : index
    %17 = memref.load %arg2[%16, %c5] : memref<2x14xf32, #tpu.memory_space<smem>>
    %18 = arith.index_cast %arg0 : i32 to index
    %c6 = arith.constant 6 : index
    %19 = memref.load %arg2[%18, %c6] : memref<2x14xf32, #tpu.memory_space<smem>>
    %20 = arith.index_cast %arg0 : i32 to index
    %c7 = arith.constant 7 : index
    %21 = memref.load %arg2[%20, %c7] : memref<2x14xf32, #tpu.memory_space<smem>>
    %22 = arith.index_cast %arg0 : i32 to index
    %c8 = arith.constant 8 : index
    %23 = memref.load %arg2[%22, %c8] : memref<2x14xf32, #tpu.memory_space<smem>>
    %24 = arith.index_cast %arg0 : i32 to index
    %c9 = arith.constant 9 : index
    %25 = memref.load %arg2[%24, %c9] : memref<2x14xf32, #tpu.memory_space<smem>>
    %26 = arith.index_cast %arg0 : i32 to index
    %c10 = arith.constant 10 : index
    %27 = memref.load %arg2[%26, %c10] : memref<2x14xf32, #tpu.memory_space<smem>>
    %28 = arith.index_cast %arg0 : i32 to index
    %c11 = arith.constant 11 : index
    %29 = memref.load %arg2[%28, %c11] : memref<2x14xf32, #tpu.memory_space<smem>>
    %30 = arith.index_cast %arg0 : i32 to index
    %c12 = arith.constant 12 : index
    %31 = memref.load %arg2[%30, %c12] : memref<2x14xf32, #tpu.memory_space<smem>>
    %32 = arith.index_cast %arg0 : i32 to index
    %c13 = arith.constant 13 : index
    %33 = memref.load %arg2[%32, %c13] : memref<2x14xf32, #tpu.memory_space<smem>>
    %34 = vector.broadcast %7 : f32 to vector<1x128xf32>
    %35 = arith.mulf %1, %34 : vector<1x128xf32>
    %36 = vector.broadcast %9 : f32 to vector<1x128xf32>
    %37 = arith.mulf %3, %36 : vector<1x128xf32>
    %38 = arith.addf %35, %37 : vector<1x128xf32>
    %39 = vector.broadcast %11 : f32 to vector<1x128xf32>
    %40 = arith.mulf %5, %39 : vector<1x128xf32>
    %41 = arith.addf %38, %40 : vector<1x128xf32>
    %42 = vector.broadcast %25 : f32 to vector<1x128xf32>
    %43 = arith.addf %41, %42 : vector<1x128xf32>
    %44 = vector.broadcast %13 : f32 to vector<1x128xf32>
    %45 = arith.mulf %1, %44 : vector<1x128xf32>
    %46 = vector.broadcast %15 : f32 to vector<1x128xf32>
    %47 = arith.mulf %3, %46 : vector<1x128xf32>
    %48 = arith.addf %45, %47 : vector<1x128xf32>
    %49 = vector.broadcast %17 : f32 to vector<1x128xf32>
    %50 = arith.mulf %5, %49 : vector<1x128xf32>
    %51 = arith.addf %48, %50 : vector<1x128xf32>
    %52 = vector.broadcast %27 : f32 to vector<1x128xf32>
    %53 = arith.addf %51, %52 : vector<1x128xf32>
    %54 = vector.broadcast %19 : f32 to vector<1x128xf32>
    %55 = arith.mulf %1, %54 : vector<1x128xf32>
    %56 = vector.broadcast %21 : f32 to vector<1x128xf32>
    %57 = arith.mulf %3, %56 : vector<1x128xf32>
    %58 = arith.addf %55, %57 : vector<1x128xf32>
    %59 = vector.broadcast %23 : f32 to vector<1x128xf32>
    %60 = arith.mulf %5, %59 : vector<1x128xf32>
    %61 = arith.addf %58, %60 : vector<1x128xf32>
    %62 = vector.broadcast %29 : f32 to vector<1x128xf32>
    %63 = arith.addf %61, %62 : vector<1x128xf32>
    %64 = tpu.reciprocal %63 {approx = true} : vector<1x128xf32> -> vector<1x128xf32>
    %65 = arith.mulf %63, %64 : vector<1x128xf32>
    %cst = arith.constant 2.000000e+00 : f32
    %66 = vector.broadcast %cst : f32 to vector<1x128xf32>
    %67 = arith.subf %66, %65 : vector<1x128xf32>
    %68 = arith.mulf %64, %67 : vector<1x128xf32>
    %69 = arith.mulf %43, %68 : vector<1x128xf32>
    %70 = vector.broadcast %31 : f32 to vector<1x128xf32>
    %71 = arith.addf %69, %70 : vector<1x128xf32>
    %c0_12 = arith.constant 0 : index
    %c0_13 = arith.constant 0 : index
    %c0_14 = arith.constant 0 : index
    %c0_15 = arith.constant 0 : index
    %72 = vector.load %arg4[%c0_12, %c0_13, %c0_14, %c0_15] : memref<1x2x1x128xf32, #tpu.memory_space<vmem>>, vector<1x1x1x128xf32>
    %73 = vector.shape_cast %72 : vector<1x1x1x128xf32> to vector<1x128xf32>
    %74 = vector.shape_cast %71 : vector<1x128xf32> to vector<1x1x1x128xf32>
    tpu.vector_store %arg4[%c0_12, %c0_13, %c0_14, %c0_15], %74 {strides = array<i32>} : memref<1x2x1x128xf32, #tpu.memory_space<vmem>>, vector<1x1x1x128xf32>,
    %75 = arith.mulf %53, %68 : vector<1x128xf32>
    %76 = vector.broadcast %33 : f32 to vector<1x128xf32>
    %77 = arith.addf %75, %76 : vector<1x128xf32>
    %c0_16 = arith.constant 0 : index
    %c1_17 = arith.constant 1 : index
    %c0_18 = arith.constant 0 : index
    %c0_19 = arith.constant 0 : index
    %78 = vector.load %arg4[%c0_16, %c1_17, %c0_18, %c0_19] : memref<1x2x1x128xf32, #tpu.memory_space<vmem>>, vector<1x1x1x128xf32>
    %79 = vector.shape_cast %78 : vector<1x1x1x128xf32> to vector<1x128xf32>
    %80 = vector.shape_cast %77 : vector<1x128xf32> to vector<1x1x1x128xf32>
    tpu.vector_store %arg4[%c0_16, %c1_17, %c0_18, %c0_19], %80 {strides = array<i32>} : memref<1x2x1x128xf32, #tpu.memory_space<vmem>>, vector<1x1x1x128xf32>,
    return
  }
  func.func @transform_0(%arg0: i32, %arg1: i32) -> (i32, i32) {
    %c0_i32 = arith.constant 0 : i32
    %c0_i32_0 = arith.constant 0 : i32
    %c0_i32_1 = arith.constant 0 : i32
    return %c0_i32, %c0_i32_0 : i32, i32
  }
  func.func @transform_1(%arg0: i32, %arg1: i32) -> (i32, i32, i32, i32) {
    %c0_i32 = arith.constant 0 : i32
    %c0_i32_0 = arith.constant 0 : i32
    %c0_i32_1 = arith.constant 0 : i32
    return %arg0, %c0_i32, %arg1, %c0_i32_0 : i32, i32, i32, i32
  }
  func.func @transform_2(%arg0: i32, %arg1: i32) -> (i32, i32, i32, i32) {
    %c0_i32 = arith.constant 0 : i32
    %c0_i32_0 = arith.constant 0 : i32
    %c0_i32_1 = arith.constant 0 : i32
    return %arg0, %c0_i32, %arg1, %c0_i32_0 : i32, i32, i32, i32
  }
}

</mosaic_0001>

<llo_original>
// kernel: tpu_custom_call.1
$region0: #{tpu_custom_call.1}
  #allocation0 [shape = 'u32[]', space=smem, size = 0x4, offset = 0x4, fixed_abs, tag = 'smem constant byte address 0x4 - core index']
  #allocation1 [shape = 'u32[144,128]{1,0:T(1,128)}', space=vmem, size = 0x12000, scoped, tag = 'internal scratch']
  %s0 = inlined_call_operand.hbm [shape: f32[2,14], index: 0, kind: input, shape index: {}]
  %s1 = inlined_call_operand.hbm [shape: f32[2,3,1,128], index: 1, kind: input, shape index: {}]
  %s2 = inlined_call_operand.hbm [shape: f32[2,2,1,128], index: 2, kind: output, shape index: {}]
  %s3 = sld [smem:[#allocation0]]
  $region49: #{tpu_custom_call.1} parent=0
    _
  %s5 = ssub.s32 1, %s3
  %s6 = scalar_select 0, %s5, %s3
  $region1: #{tpu_custom_call.1} parent=0
    #allocation2 [shape = 'u8[1024]{0}', space=smem, size = 0x400, scoped, tag = 'input window, operand 0, single buffered']
    #allocation3 [shape = 's32[2]{0}', space=sflag, size = 0x8, scoped, tag = 'scoped memory for tpu_custom_call.1']
    #allocation4 [shape = 's32[2]{0}', space=sflag, size = 0x8, scoped, tag = 'scoped memory for tpu_custom_call.1']
    #allocation5 [shape = 's32[2]{0}', space=sflag, size = 0x8, scoped, tag = 'scoped memory for tpu_custom_call.1']
    #allocation6 [shape = 'u8[3072]{0}', space=vmem, size = 0xc00, scoped, tag = 'input window, operand 1']
    #allocation7 [shape = 'u8[2048]{0}', space=vmem, size = 0x800, scoped, tag = 'output window, operand 0']
    %7 = vsyncpa [#allocation5], 0
    %8 = vsyncpa [#allocation3], 0
    %s9 = scalar_lea.sflag [#allocation3], 1
    %10 = vsyncpa %s9, 0
    %11 = vsyncpa [#allocation4], 0
    %s12 = scalar_lea.sflag [#allocation4], 1
    %13 = vsyncpa %s12, 0
    loop: start=0, step=1, limit=4
    $region2: #{tpu_custom_call.1} parent=1 // loop_pre_header
      _
    $region3: #{tpu_custom_call.1} parent=1 // loop_header
      %s15 = sphi 0, %s19
      %p16 = scmp.ge.s32.totalorder %s15, 4
      %s22 = sphi 0, %s34
      %s23 = sphi 0, %s30
      %s24 = sphi 0, %s22
      %s25 = sphi 0, %s23
      %s26 = sphi 0, %s24
      %s27 = sphi 0, %s25
      %s35 = sphi 0, %s35
      %s37 = sphi 0, %s35
      %s38 = sphi 0, %s37
      %s52 = sphi 0, %s38
      %s60 = sphi 0, %s62
      %s63 = sphi 0, %s60
      %s64 = sphi 0, %s63
      %s80 = sphi 0, %s64
      %s88 = sphi 0, %s90
      %s91 = sphi 0, %s88
      %s92 = sphi 0, %s91
      %s108 = sphi 0, %s92
    $region4: #{tpu_custom_call.1} parent=1 // loop_header_branch
      %18 = sbr.rel (%p16) target = $region8
    $region5: #{tpu_custom_call.1} parent=1 // loop_body
      %s20 = ssub.s32 %s15, 1
      %s21 = ssub.s32 %s15, 2
      %s28 = sadd.s32 1, %s23
      %p29 = scmp.ge.s32.totalorder %s28, 1
      %s30 = scalar_select %p29, 0, %s28
      %s31 = sadd.s32 1, %s22
      %s32 = scalar_select %p29, %s31, %s22
      %p33 = scmp.ge.s32.totalorder %s32, 2
      %s34 = scalar_select %p33, 0, %s32
      %s36 = sadd.s32 %s35, 1
      %p39 = scmp.eq.s32.totalorder %s15, 1
      %p40 = scmp.ne.s32.totalorder %s35, %s37
      %p41 = scmp.eq.s32.totalorder %s15, 0
      %p42 = por %p40, %p41
      %p43 = scmp.ne.s32.totalorder %s35, %s37
      %p44 = scmp.eq.s32.totalorder %s20, 1
      %p45 = por %p43, %p44
      %p46 = scmp.ne.s32.totalorder %s37, %s38
      %p47 = scmp.eq.s32.totalorder %s20, 0
      %p48 = por %p46, %p47
      %p49 = scmp.ne.s32.totalorder %s37, %s38
      %p50 = scmp.eq.s32.totalorder %s21, 1
      %p51 = por %p49, %p50
      %p53 = scmp.ne.s32.totalorder %s38, %s52
      %p54 = scmp.eq.s32.totalorder %s21, 0
      %p55 = por %p53, %p54
      %s56 = ssub.s32 %s22, %s34
      %s57 = ssub.s32 %s23, %s30
      %s58 = sor.u32 %s56, %s57
      %p59 = scmp.eq.s32.totalorder %s58, 0
      %s61 = sadd.s32 %s60, 1
      %s62 = scalar_select %p59, %s60, %s61
      %p65 = pneg %p59
      %p66 = scmp.eq.s32.totalorder %s15, 1
      %p67 = por %p65, %p66
      %p68 = scmp.ne.s32.totalorder %s60, %s63
      %p69 = scmp.eq.s32.totalorder %s15, 0
      %p70 = por %p68, %p69
      %p71 = scmp.ne.s32.totalorder %s60, %s63
      %p72 = scmp.eq.s32.totalorder %s20, 1
      %p73 = por %p71, %p72
      %p74 = scmp.ne.s32.totalorder %s63, %s64
      %p75 = scmp.eq.s32.totalorder %s20, 0
      %p76 = por %p74, %p75
      %p77 = scmp.ne.s32.totalorder %s63, %s64
      %p78 = scmp.eq.s32.totalorder %s21, 1
      %p79 = por %p77, %p78
      %p81 = scmp.ne.s32.totalorder %s64, %s80
      %p82 = scmp.eq.s32.totalorder %s21, 0
      %p83 = por %p81, %p82
      %s84 = ssub.s32 %s22, %s34
      %s85 = ssub.s32 %s23, %s30
      %s86 = sor.u32 %s84, %s85
      %p87 = scmp.eq.s32.totalorder %s86, 0
      %s89 = sadd.s32 %s88, 1
      %s90 = scalar_select %p87, %s88, %s89
      %p93 = pneg %p87
      %p94 = scmp.eq.s32.totalorder %s15, 1
      %p95 = por %p93, %p94
      %p96 = scmp.ne.s32.totalorder %s88, %s91
      %p97 = scmp.eq.s32.totalorder %s15, 0
      %p98 = por %p96, %p97
      %p99 = scmp.ne.s32.totalorder %s88, %s91
      %p100 = scmp.eq.s32.totalorder %s20, 1
      %p101 = por %p99, %p100
      %p102 = scmp.ne.s32.totalorder %s91, %s92
      %p103 = scmp.eq.s32.totalorder %s20, 0
      %p104 = por %p102, %p103
      %p105 = scmp.ne.s32.totalorder %s91, %s92
      %p106 = scmp.eq.s32.totalorder %s21, 1
      %p107 = por %p105, %p106
      %p109 = scmp.ne.s32.totalorder %s92, %s108
      %p110 = scmp.eq.s32.totalorder %s21, 0
      %p111 = por %p109, %p110
      %p112 = scmp.le.s32.totalorder 1, %s15
      %p113 = scmp.lt.s32.totalorder %s15, 3
      %p114 = pnand %p112, %p113
      %p115 = pneg %p114
      // Predicated region
      $region9: #{tpu_custom_call.1} parent=5 // pred_check
        _
      $region10: #{tpu_custom_call.1} parent=5 // pred_check_branch
        %117 = sbr.rel (%p114) target = $region12
      $region11: #{tpu_custom_call.1} parent=5 // pred_region
        %s118 = ssub.s32 %s15, 1
        // Predicated region
        $region13: #{tpu_custom_call.1} parent=11 // pred_check
          %p119 = pneg %p48
        $region14: #{tpu_custom_call.1} parent=11 // pred_check_branch
          %121 = sbr.rel (%p119) target = $region16
        $region15: #{tpu_custom_call.1} parent=11 // pred_region
          %s123 = ssub.s32 32, 32
          %124 = vsyncadd [#allocation5], %s123
          %127 = dma.hbm_to_smem %s0, 32, [#allocation2], [#allocation5]
        $region16: #{tpu_custom_call.1} parent=11 // pred_fallthru
          _
      $region12: #{tpu_custom_call.1} parent=5 // pred_fallthru
        _
      %p128 = scmp.lt.s32.totalorder %s15, 2
      // Predicated region
      $region17: #{tpu_custom_call.1} parent=5 // pred_check
        %p129 = pneg %p128
      $region18: #{tpu_custom_call.1} parent=5 // pred_check_branch
        %131 = sbr.rel (%p129) target = $region20
      $region19: #{tpu_custom_call.1} parent=5 // pred_region
        // Predicated region
        $region21: #{tpu_custom_call.1} parent=19 // pred_check
          %p132 = pneg %p70
        $region22: #{tpu_custom_call.1} parent=19 // pred_check_branch
          %134 = sbr.rel (%p132) target = $region24
        $region23: #{tpu_custom_call.1} parent=19 // pred_region
          %s135 = sand.u32 %s60, 1
          %s136 = scalar_lea.sflag [#allocation3], %s135
          %s137 = sand.u32 %s60, 1
          %s138 = smul.addr %s137, 3
          %s139 = scalar_lea.vmem [#allocation6], %s138
          %s141 = ssub.s32 48, 48
          %142 = vsyncadd %s136, %s141
          %s143 = smul.addr %s22, 3
          %s144 = sadd.s32 %s23, %s143
          %s145 = smul.addr %s144, 16
          %s146 = scalar_lea.hbm %s1, %s145
          %s147 = sshll.u32 %s139, 4
          %s148 = int_to_ptr.vmem [resolvable:$true] %s147
          %153 = dma.hbm_to_vmem [thread:$0]  %s146, 48, %s148, %s136, 16, 16, 1
        $region24: #{tpu_custom_call.1} parent=19 // pred_fallthru
          _
      $region20: #{tpu_custom_call.1} parent=5 // pred_fallthru
        _
      %p154 = scmp.le.s32.totalorder 1, %s15
      %p155 = scmp.lt.s32.totalorder %s15, 3
      %p156 = pnand %p154, %p155
      %p157 = pneg %p156
      // Predicated region
      $region25: #{tpu_custom_call.1} parent=5 // pred_check
        _
      $region26: #{tpu_custom_call.1} parent=5 // pred_check_branch
        %159 = sbr.rel (%p156) target = $region28
      $region27: #{tpu_custom_call.1} parent=5 // pred_region
        %s160 = ssub.s32 %s15, 1
        // Predicated region
        $region29: #{tpu_custom_call.1} parent=27 // pred_check
          %p161 = pneg %p48
        $region30: #{tpu_custom_call.1} parent=27 // pred_check_branch
          %163 = sbr.rel (%p161) target = $region32
        $region31: #{tpu_custom_call.1} parent=27 // pred_region
          %164 = dma.done [#allocation5], 32
        $region32: #{tpu_custom_call.1} parent=27 // pred_fallthru
          _
        %s165 = sand.u32 %s63, 1
        %s166 = scalar_lea.sflag [#allocation3], %s165
        %s167 = sand.u32 %s63, 1
        %s168 = smul.addr %s167, 3
        %s169 = scalar_lea.vmem [#allocation6], %s168
        // Predicated region
        $region33: #{tpu_custom_call.1} parent=27 // pred_check
          %p170 = pneg %p76
        $region34: #{tpu_custom_call.1} parent=27 // pred_check_branch
          %172 = sbr.rel (%p170) target = $region36
        $region35: #{tpu_custom_call.1} parent=27 // pred_region
          %173 = dma.done %s166, 48
        $region36: #{tpu_custom_call.1} parent=27 // pred_fallthru
          _
        %174 = sfence
        %p175 = pneg %p48
        %p176 = pneg %p45
        %s177 = sand.u32 %s63, 1
        %s178 = scalar_lea.sflag [#allocation3], %s177
        %s179 = sand.u32 %s63, 1
        %s180 = smul.addr %s179, 3
        %s181 = scalar_lea.vmem [#allocation6], %s180
        %p182 = pneg %p76
        %p183 = pneg %p73
        %p184 = pneg %p104
        %p185 = pneg %p101
        %s186 = sand.u32 %s91, 1
        %s187 = scalar_lea.sflag [#allocation4], %s186
        %s188 = sand.u32 %s91, 1
        %s189 = smul.addr %s188, 2
        %s190 = scalar_lea.vmem [#allocation7], %s189
        %v191 = vld [vmem:[%s169] sm:$0x1]
        %s192 = scalar_lea.vmem %s169, 1 [#allocation6]
        %v193 = vld [vmem:[%s192] sm:$0x1]
        %s194 = scalar_lea.vmem %s169, 2 [#allocation6]
        %v195 = vld [vmem:[%s194] sm:$0x1]
        %s196 = smul.u32 %s24, 128
        %s197 = sld [smem:[#allocation2 + %s196]]
        %s198 = sadd.s32 %s196, 1
        %s199 = sld [smem:[#allocation2 + %s198]]
        %s200 = sadd.s32 %s196, 2
        %s201 = sld [smem:[#allocation2 + %s200]]
        %s202 = sadd.s32 %s196, 3
        %s203 = sld [smem:[#allocation2 + %s202]]
        %s204 = sadd.s32 %s196, 4
        %s205 = sld [smem:[#allocation2 + %s204]]
        %s206 = sadd.s32 %s196, 5
        %s207 = sld [smem:[#allocation2 + %s206]]
        %s208 = sadd.s32 %s196, 6
        %s209 = sld [smem:[#allocation2 + %s208]]
        %s210 = sadd.s32 %s196, 7
        %s211 = sld [smem:[#allocation2 + %s210]]
        %s212 = sadd.s32 %s196, 8
        %s213 = sld [smem:[#allocation2 + %s212]]
        %s214 = sadd.s32 %s196, 9
        %s215 = sld [smem:[#allocation2 + %s214]]
        %s216 = sadd.s32 %s196, 10
        %s217 = sld [smem:[#allocation2 + %s216]]
        %s218 = sadd.s32 %s196, 11
        %s219 = sld [smem:[#allocation2 + %s218]]
        %s220 = sadd.s32 %s196, 12
        %s221 = sld [smem:[#allocation2 + %s220]]
        %s222 = sadd.s32 %s196, 13
        %s223 = sld [smem:[#allocation2 + %s222]]
        %v224 = vstv %s197
        %v225 = vmul.f32 %v191, %v224
        %v226 = vstv %s199
        %v227 = vmul.f32 %v193, %v226
        %v228 = vadd.f32 %v225, %v227
        %v229 = vstv %s201
        %v230 = vmul.f32 %v195, %v229
        %v231 = vadd.f32 %v228, %v230
        %v232 = vstv %s215
        %v233 = vadd.f32 %v231, %v232
        %v234 = vstv %s203
        %v235 = vmul.f32 %v191, %v234
        %v236 = vstv %s205
        %v237 = vmul.f32 %v193, %v236
        %v238 = vadd.f32 %v235, %v237
        %v239 = vstv %s207
        %v240 = vmul.f32 %v195, %v239
        %v241 = vadd.f32 %v238, %v240
        %v242 = vstv %s217
        %v243 = vadd.f32 %v241, %v242
        %v244 = vstv %s209
        %v245 = vmul.f32 %v191, %v244
        %v246 = vstv %s211
        %v247 = vmul.f32 %v193, %v246
        %v248 = vadd.f32 %v245, %v247
        %v249 = vstv %s213
        %v250 = vmul.f32 %v195, %v249
        %v251 = vadd.f32 %v248, %v250
        %v252 = vstv %s219
        %v253 = vadd.f32 %v251, %v252
        %v254 = vrcp.pop %v253
        %v255 = vmul.f32 %v253, %v254
        %v256 = vsub.f32 2.0, %v255
        %v257 = vmul.f32 %v254, %v256
        %v258 = vmul.f32 %v233, %v257
        %v259 = vstv %s221
        %v260 = vadd.f32 %v258, %v259
        %261 = vst [vmem:[%s190] sm:$0x1] %v260
        %v262 = vmul.f32 %v243, %v257
        %v263 = vstv %s223
        %v264 = vadd.f32 %v262, %v263
        %s265 = scalar_lea.vmem %s190, 1 [#allocation7]
        %266 = vst [vmem:[%s265] sm:$0x1] %v264
        %s267 = sand.u32 %s91, 1
        %s268 = scalar_lea.sflag [#allocation4], %s267
        %s269 = sand.u32 %s91, 1
        %s270 = smul.addr %s269, 2
        %s271 = scalar_lea.vmem [#allocation7], %s270
        // Predicated region
        $region37: #{tpu_custom_call.1} parent=27 // pred_check
          %p272 = pneg %p101
        $region38: #{tpu_custom_call.1} parent=27 // pred_check_branch
          %274 = sbr.rel (%p272) target = $region40
        $region39: #{tpu_custom_call.1} parent=27 // pred_region
          %s276 = ssub.s32 32, 32
          %277 = vsyncadd %s268, %s276
          %s278 = smul.addr %s24, 2
          %s279 = sadd.s32 %s25, %s278
          %s280 = smul.addr %s279, 16
          %s281 = scalar_lea.hbm %s2, %s280
          %s282 = sshll.u32 %s271, 4
          %s283 = int_to_ptr.vmem [resolvable:$true] %s282
          %288 = dma.vmem_to_hbm [thread:$0]  %s283, 32, %s281, %s268, 16, 16, 1
        $region40: #{tpu_custom_call.1} parent=27 // pred_fallthru
          _
      $region28: #{tpu_custom_call.1} parent=5 // pred_fallthru
        _
      %p289 = scmp.le.s32.totalorder 2, %s15
      // Predicated region
      $region41: #{tpu_custom_call.1} parent=5 // pred_check
        %p290 = pneg %p289
      $region42: #{tpu_custom_call.1} parent=5 // pred_check_branch
        %292 = sbr.rel (%p290) target = $region44
      $region43: #{tpu_custom_call.1} parent=5 // pred_region
        %s293 = ssub.s32 %s15, 2
        // Predicated region
        $region45: #{tpu_custom_call.1} parent=43 // pred_check
          %p294 = pneg %p107
        $region46: #{tpu_custom_call.1} parent=43 // pred_check_branch
          %296 = sbr.rel (%p294) target = $region48
        $region47: #{tpu_custom_call.1} parent=43 // pred_region
          %s297 = sand.u32 %s92, 1
          %s298 = scalar_lea.sflag [#allocation4], %s297
          %s299 = sand.u32 %s92, 1
          %s300 = smul.addr %s299, 2
          %s301 = scalar_lea.vmem [#allocation7], %s300
          %302 = dma.done %s298, 32
        $region48: #{tpu_custom_call.1} parent=43 // pred_fallthru
          _
      $region44: #{tpu_custom_call.1} parent=5 // pred_fallthru
        _
    $region6: #{tpu_custom_call.1} parent=1 // loop_footer
      %s19 = sadd.s32 1, %s15
    $region7: #{tpu_custom_call.1} parent=1 // loop_footer_branch
      %14 = sbr.rel target = $region3
    $region8: #{tpu_custom_call.1} parent=1 // loop_exit
      _
    %303 = vsyncpa [#allocation3], 1
    %s304 = scalar_lea.sflag [#allocation3], 1
    %305 = vsyncpa %s304, 1
    %306 = vsyncpa [#allocation4], 1
    %s307 = scalar_lea.sflag [#allocation4], 1
    %308 = vsyncpa %s307, 1
    %309 = vsyncpa [#allocation5], 1
    %s310 = scalar_lea.sflag [#allocation5], 1
    %311 = vsyncpa %s310, 1

</llo_original>
